<compile_context>
chip_gen: v7x
topology: tpu7x:2x2x1
jax: 0.10.0
libtpu: 0.0.40
codegen_flags: <defaults>
</compile_context>

<pallas_src>
import jax
import jax.numpy as jnp
import numpy as np
from jax.experimental import pallas as pl
from jax.experimental.pallas import tpu as pltpu


def _make_kernel(H, W, k, C):
    p = (k - 1) // 2
    kk = k * k
    HW = H * W

    def kernel(x_ref, w1t_ref, b1_ref, w2t_ref, b2_ref, mask_ref, wconv_ref, o_ref):
        bt = x_ref.shape[0]

        # One f32 read of the block for the reduction paths; the epilogue
        # re-reads x_ref so the compiler does not have to keep this full copy
        # live across the whole body (vreg pressure at large batch tiles).
        xf = x_ref[...].astype(jnp.float32)                      # (bt, C, HW)

        # ---------------- Channel attention ----------------
        # global avg pool over H*W (lane reduction) -> (bt, C)
        chan_avg = jnp.sum(xf, axis=2) * (1.0 / HW)
        if C >= 64:
            # Production-sized C: run the two small FCs on the MXU.
            h = jnp.dot(chan_avg, w1t_ref[...],
                        preferred_element_type=jnp.float32) + b1_ref[...]
            h = jnp.maximum(h, 0.0)                              # (bt, C4)
            logits = jnp.dot(h, w2t_ref[...],
                             preferred_element_type=jnp.float32) + b2_ref[...]
        else:
            # Tiny C: broadcast-mul + reduce beats MXU padding overhead.
            h = jnp.sum(chan_avg[:, :, None] * w1t_ref[...][None, :, :],
                        axis=1) + b1_ref[...]                    # (bt, C4)
            h = jnp.maximum(h, 0.0)
            logits = jnp.sum(h[:, :, None] * w2t_ref[...][None, :, :],
                             axis=1) + b2_ref[...]               # (bt, C)
        att_c = jax.nn.sigmoid(logits)                           # (bt, C)

        # ---------------- Spatial attention ----------------
        # channel max / avg (sublane reductions), sublane-dense (bt, HW)
        mx = jnp.max(xf, axis=1)                                 # (bt, HW)
        av = jnp.sum(xf, axis=1) * (1.0 / C)                     # (bt, HW)

        masks = mask_ref[...]                                    # (k*k, HW)
        bias = wconv_ref[2 * kk]
        acc = jnp.zeros((bt, HW), jnp.float32) + bias
        for di in range(-p, p + 1):
            for dj in range(-p, p + 1):
                t = (di + p) * k + (dj + p)
                wm = wconv_ref[t]            # max-pool channel weight
                wa = wconv_ref[kk + t]       # avg-pool channel weight
                tap = wm * mx + wa * av      # (bt, HW)
                off = di * W + dj
                if off != 0:
                    # shifted[q] = tap[(q + off) mod HW]; wraparound is
                    # cancelled by the host-precomputed boundary mask.
                    tap = pltpu.roll(tap, (-off) % HW, axis=1)
                acc = acc + tap * masks[t:t + 1, :]
        att_s = jax.nn.sigmoid(acc)                              # (bt, HW)

        # -------- Epilogue: f1 + f2 + x == x * (att_c + att_s + 1) --------
        if o_ref.dtype == jnp.bfloat16:
            # bf16 VPUs (v6e/v7x): keep the dominant elementwise pass in bf16;
            # all reductions above already accumulated in f32.
            ac = att_c.astype(jnp.bfloat16)[:, :, None]
            asp = (att_s + 1.0).astype(jnp.bfloat16)[:, None, :]
            o_ref[...] = x_ref[...] * (ac + asp)
        else:
            o_ref[...] = (x_ref[...].astype(jnp.float32)
                          * (att_c[:, :, None] + (att_s[:, None, :] + 1.0))
                          ).astype(o_ref.dtype)

    return kernel


def _boundary_masks(H, W, k):
    """(k*k, H*W) 0/1 masks: tap (di, dj) valid at output pixel q (host-side)."""
    p = (k - 1) // 2
    q = np.arange(H * W)
    row, col = q // W, q % W
    m = np.zeros((k * k, H * W), np.float32)
    for di in range(-p, p + 1):
        for dj in range(-p, p + 1):
            ok = (row + di >= 0) & (row + di < H) & (col + dj >= 0) & (col + dj < W)
            m[(di + p) * k + (dj + p)] = ok.astype(np.float32)
    return m


def _vmem_limit_bytes():
    """Generation-aware VMEM plan: 3/4 of physical (96 MiB v5e/v6e, 48 MiB v7x)."""
    cap = None
    try:
        cap = getattr(pltpu.get_tpu_info(), "vmem_capacity_bytes", None)
    except Exception:
        cap = None
    if not cap:
        cap = 64 * 1024 * 1024          # conservative fallback: v7x-sized VMEM
    return max(32 * 1024 * 1024, min((int(cap) * 3) // 4, 96 * 1024 * 1024))


def _pick_batch_tile(B, C, HW, itemsize, vmem_limit):
    # Estimated VMEM per batch element in a block:
    #   2x double-buffered input + 2x double-buffered output + ~2 f32 temps.
    per_elem = C * HW * (4 * itemsize + 8)
    bt = max(1, min(B, vmem_limit // per_elem))
    # Keep >=2 grid steps whenever B >= 2 so the "parallel" batch axis can be
    # sharded across v7x's two TensorCores (negligible cost on 1-TC chips).
    if B >= 2:
        bt = min(bt, -(-B // 2))
    # TODO(synk): H-tiled two-pass scheme for blocks where a single batch
    # element already exceeds the VMEM budget.
    return int(bt)


def _mixed_attention_impl(x, fc1_w, fc1_b, fc2_w, fc2_b, conv_w, conv_b):
    B, C, H, W = x.shape
    k = conv_w.shape[-1]
    C4 = fc1_w.shape[0]
    HW = H * W

    assert k % 2 == 1, "SpatialAttention requires an odd kernel size"
    assert H == W, "ChannelAttention's avg_pool2d(kernel_size=W) implies H == W"
    # TODO(synk): pad H*W up to a multiple of 128 (and mask) for arbitrary sizes.
    assert HW % 128 == 0, "lane-dense layout assumes H*W is a multiple of 128"

    # Free reshape to the lane-dense (B, C, H*W) view; no HBM transposes.
    x2 = x.reshape(B, C, HW)
    w1t = fc1_w.T.astype(jnp.float32)                   # (C, C4)  = fc1.weight^T
    b1 = fc1_b.reshape(1, C4).astype(jnp.float32)       # (1, C4)
    w2t = fc2_w.T.astype(jnp.float32)                   # (C4, C)  = fc2.weight^T
    b2 = fc2_b.reshape(1, C).astype(jnp.float32)        # (1, C)
    masks = jnp.asarray(_boundary_masks(H, W, k))       # (k*k, HW) grid-invariant
    conv_flat = jnp.concatenate(
        [conv_w[0, 0].reshape(-1), conv_w[0, 1].reshape(-1), conv_b.reshape(-1)]
    ).astype(jnp.float32)                               # (2*k*k + 1,) SMEM scalars

    vmem_limit = _vmem_limit_bytes()
    bt = _pick_batch_tile(B, C, HW, x.dtype.itemsize, vmem_limit)
    nsteps = pl.cdiv(B, bt)
    Bp = nsteps * bt
    if Bp != B:                          # robust to non-divisor / prime B
        x2 = jnp.pad(x2, ((0, Bp - B), (0, 0), (0, 0)))

    cost = pl.CostEstimate(
        flops=int(Bp * HW * (6 * C + 6 * k * k) + 4 * Bp * C * C4),
        transcendentals=int(Bp * (C + HW)),
        bytes_accessed=int(2 * Bp * C * HW * x.dtype.itemsize),
    )

    out2 = pl.pallas_call(
        _make_kernel(H, W, k, C),
        out_shape=jax.ShapeDtypeStruct((Bp, C, HW), x.dtype),
        grid=(nsteps,),
        in_specs=[
            pl.BlockSpec((bt, C, HW), lambda b: (b, 0, 0)),        # x (lane-dense)
            pl.BlockSpec((C, C4), lambda b: (0, 0)),               # fc1.weight^T
            pl.BlockSpec((1, C4), lambda b: (0, 0)),               # fc1.bias
            pl.BlockSpec((C4, C), lambda b: (0, 0)),               # fc2.weight^T
            pl.BlockSpec((1, C), lambda b: (0, 0)),                # fc2.bias
            pl.BlockSpec((k * k, HW), lambda b: (0, 0)),           # boundary masks
            pl.BlockSpec(memory_space=pltpu.MemorySpace.SMEM),     # conv w + b flat
        ],
        out_specs=pl.BlockSpec((bt, C, HW), lambda b: (b, 0, 0)),  # lane-dense store
        compiler_params=pltpu.CompilerParams(
            dimension_semantics=("parallel",),     # batch axis: v7x 2-TC sharding
            vmem_limit_bytes=vmem_limit,
        ),
        cost_estimate=cost,
    )(x2, w1t, b1, w2t, b2, masks, conv_flat)

    if Bp != B:
        out2 = out2[:B]
    return out2.reshape(B, C, H, W)


mixed_attention = jax.jit(_mixed_attention_impl)


def mixed_attention_reference(x, fc1_w, fc1_b, fc2_w, fc2_b, conv_w, conv_b):
    """Pure-JAX NCHW reference mirroring the torch forward."""
    B, C, H, W = x.shape
    k = conv_w.shape[-1]
    p = (k - 1) // 2
    # channel attention
    avg = jnp.mean(x, axis=(2, 3))                                        # (B, C)
    h = jnp.sum(avg[:, None, :] * fc1_w[None], axis=-1) + fc1_b           # (B, C4)
    h = jnp.maximum(h, 0.0)
    logits = jnp.sum(h[:, None, :] * fc2_w[None], axis=-1) + fc2_b        # (B, C)
    att_c = jax.nn.sigmoid(logits)
    f1 = x * att_c[:, :, None, None]
    # spatial attention
    mx = jnp.max(x, axis=1, keepdims=True)
    av = jnp.mean(x, axis=1, keepdims=True)
    pool = jnp.concatenate([mx, av], axis=1)                              # (B,2,H,W)
    padded = jnp.pad(pool, ((0, 0), (0, 0), (p, p), (p, p)))
    conv = jnp.zeros((B, 1, H, W), jnp.float32) + conv_b[0]
    for ic in range(2):
        for i in range(k):
            for j in range(k):
                conv = conv + conv_w[0, ic, i, j] * padded[:, ic:ic + 1, i:i + H, j:j + W]
    att_s = jax.nn.sigmoid(conv)
    f2 = x * att_s
    return f1 + f2 + x


if __name__ == "__main__":
    B, C, H, W = 2, 8, 16, 16        # H == W, as the module's avg_pool2d implies
    k = 3
    C4 = C // 4

    key = jax.random.PRNGKey(0)
    kx, k1, k2, k3, k4, k5, k6 = jax.random.split(key, 7)
    x = jax.random.normal(kx, (B, C, H, W), jnp.float32)
    fc1_w = jax.random.normal(k1, (C4, C), jnp.float32) * 0.3    # nn.Linear(C, C//4)
    fc1_b = jax.random.normal(k2, (C4,), jnp.float32) * 0.1
    fc2_w = jax.random.normal(k3, (C, C4), jnp.float32) * 0.3    # nn.Linear(C//4, C)
    fc2_b = jax.random.normal(k4, (C,), jnp.float32) * 0.1
    conv_w = jax.random.normal(k5, (1, 2, k, k), jnp.float32) * 0.3  # Conv2d(2,1,k)
    conv_b = jax.random.normal(k6, (1,), jnp.float32) * 0.1

    out = mixed_attention(x, fc1_w, fc1_b, fc2_w, fc2_b, conv_w, conv_b)
    out = jax.block_until_ready(out)

    ref = mixed_attention_reference(x, fc1_w, fc1_b, fc2_w, fc2_b, conv_w, conv_b)
    np.testing.assert_allclose(np.asarray(out), np.asarray(ref), rtol=1e-4, atol=1e-4)

    print("KERNEL_OK")
</pallas_src>

<mosaic_0001>
module attributes {stable_mosaic.version = 11 : i64} {
  func.func @kernel(%arg0: i32, %arg1: memref<1x8x256xf32, #tpu.memory_space<vmem>>, %arg2: memref<8x2xf32, #tpu.memory_space<vmem>>, %arg3: memref<1x2xf32, #tpu.memory_space<vmem>>, %arg4: memref<2x8xf32, #tpu.memory_space<vmem>>, %arg5: memref<1x8xf32, #tpu.memory_space<vmem>>, %arg6: memref<9x256xf32, #tpu.memory_space<vmem>>, %arg7: memref<19xf32, #tpu.memory_space<smem>>, %arg8: memref<1x8x256xf32, #tpu.memory_space<vmem>>) attributes {dimension_semantics = [#tpu.dimension_semantics<parallel>], iteration_bounds = array<i64: 2>, scalar_prefetch = 0 : i64, scratch_operands = 0 : i64, tpu.core_type = #tpu.core_type<tc>, window_params = [{transform_indices = @transform_0, window_bounds = array<i64: 1, 8, 256>}, {pipeline_mode = #tpu.pipeline_mode<synchronous>, transform_indices = @transform_1, window_bounds = array<i64: 8, 2>}, {pipeline_mode = #tpu.pipeline_mode<synchronous>, transform_indices = @transform_2, window_bounds = array<i64: 1, 2>}, {pipeline_mode = #tpu.pipeline_mode<synchronous>, transform_indices = @transform_3, window_bounds = array<i64: 2, 8>}, {pipeline_mode = #tpu.pipeline_mode<synchronous>, transform_indices = @transform_4, window_bounds = array<i64: 1, 8>}, {pipeline_mode = #tpu.pipeline_mode<synchronous>, transform_indices = @transform_5, window_bounds = array<i64: 9, 256>}, {transform_indices = @transform_6, window_bounds = array<i64: 19>}, {transform_indices = @transform_7, window_bounds = array<i64: 1, 8, 256>}]} {
    %c0 = arith.constant 0 : index
    %c0_0 = arith.constant 0 : index
    %c0_1 = arith.constant 0 : index
    %0 = vector.load %arg1[%c0, %c0_0, %c0_1] : memref<1x8x256xf32, #tpu.memory_space<vmem>>, vector<1x8x256xf32>
    %cst = arith.constant dense<0.000000e+00> : vector<1x8xf32>
    %1 = vector.multi_reduction <add>, %0, %cst [2] : vector<1x8x256xf32> to vector<1x8xf32>
    %cst_2 = arith.constant 3.906250e-03 : f32
    %2 = vector.broadcast %cst_2 : f32 to vector<1x8xf32>
    %3 = arith.mulf %1, %2 : vector<1x8xf32>
    %4 = vector.shape_cast %3 : vector<1x8xf32> to vector<1x8x1xf32>
    %c0_3 = arith.constant 0 : index
    %c0_4 = arith.constant 0 : index
    %5 = vector.load %arg2[%c0_3, %c0_4] : memref<8x2xf32, #tpu.memory_space<vmem>>, vector<8x2xf32>
    %6 = vector.shape_cast %5 : vector<8x2xf32> to vector<1x8x2xf32>
    %7 = vector.broadcast %4 : vector<1x8x1xf32> to vector<1x8x2xf32>
    %8 = arith.mulf %7, %6 : vector<1x8x2xf32>
    %cst_5 = arith.constant dense<0.000000e+00> : vector<1x2xf32>
    %9 = vector.multi_reduction <add>, %8, %cst_5 [1] : vector<1x8x2xf32> to vector<1x2xf32>
    %c0_6 = arith.constant 0 : index
    %c0_7 = arith.constant 0 : index
    %10 = vector.load %arg3[%c0_6, %c0_7] : memref<1x2xf32, #tpu.memory_space<vmem>>, vector<1x2xf32>
    %11 = arith.addf %9, %10 : vector<1x2xf32>
    %cst_8 = arith.constant 0.000000e+00 : f32
    %12 = vector.broadcast %cst_8 : f32 to vector<1x2xf32>
    %13 = arith.maximumf %11, %12 : vector<1x2xf32>
    %14 = vector.shape_cast %13 : vector<1x2xf32> to vector<1x2x1xf32>
    %c0_9 = arith.constant 0 : index
    %c0_10 = arith.constant 0 : index
    %15 = vector.load %arg4[%c0_9, %c0_10] : memref<2x8xf32, #tpu.memory_space<vmem>>, vector<2x8xf32>
    %16 = vector.shape_cast %15 : vector<2x8xf32> to vector<1x2x8xf32>
    %17 = vector.broadcast %14 : vector<1x2x1xf32> to vector<1x2x8xf32>
    %18 = arith.mulf %17, %16 : vector<1x2x8xf32>
    %cst_11 = arith.constant dense<0.000000e+00> : vector<1x8xf32>
    %19 = vector.multi_reduction <add>, %18, %cst_11 [1] : vector<1x2x8xf32> to vector<1x8xf32>
    %c0_12 = arith.constant 0 : index
    %c0_13 = arith.constant 0 : index
    %20 = vector.load %arg5[%c0_12, %c0_13] : memref<1x8xf32, #tpu.memory_space<vmem>>, vector<1x8xf32>
    %21 = arith.addf %19, %20 : vector<1x8xf32>
    %22 = arith.negf %21 : vector<1x8xf32>
    %23 = math.exp %22 : vector<1x8xf32>
    %cst_14 = arith.constant 1.000000e+00 : f32
    %24 = vector.broadcast %cst_14 : f32 to vector<1x8xf32>
    %25 = arith.addf %24, %23 : vector<1x8xf32>
    %26 = arith.divf %24, %25 : vector<1x8xf32>
    %cst_15 = arith.constant dense<0xFF800000> : vector<1x256xf32>
    %27 = vector.multi_reduction <maximumf>, %0, %cst_15 [1] : vector<1x8x256xf32> to vector<1x256xf32>
    %cst_16 = arith.constant dense<0.000000e+00> : vector<1x256xf32>
    %28 = vector.multi_reduction <add>, %0, %cst_16 [1] : vector<1x8x256xf32> to vector<1x256xf32>
    %cst_17 = arith.constant 1.250000e-01 : f32
    %29 = vector.broadcast %cst_17 : f32 to vector<1x256xf32>
    %30 = arith.mulf %28, %29 : vector<1x256xf32>
    %c0_18 = arith.constant 0 : index
    %c0_19 = arith.constant 0 : index
    %31 = vector.load %arg6[%c0_18, %c0_19] : memref<9x256xf32, #tpu.memory_space<vmem>>, vector<9x256xf32>
    %c18 = arith.constant 18 : index
    %32 = memref.load %arg7[%c18] : memref<19xf32, #tpu.memory_space<smem>>
    %cst_20 = arith.constant 0.000000e+00 : f32
    %33 = vector.broadcast %cst_20 : f32 to vector<1x256xf32>
    %34 = vector.broadcast %32 : f32 to vector<1x256xf32>
    %35 = arith.addf %33, %34 : vector<1x256xf32>
    %c0_21 = arith.constant 0 : index
    %36 = memref.load %arg7[%c0_21] : memref<19xf32, #tpu.memory_space<smem>>
    %c9 = arith.constant 9 : index
    %37 = memref.load %arg7[%c9] : memref<19xf32, #tpu.memory_space<smem>>
    %38 = vector.broadcast %36 : f32 to vector<1x256xf32>
    %39 = arith.mulf %38, %27 : vector<1x256xf32>
    %40 = vector.broadcast %37 : f32 to vector<1x256xf32>
    %41 = arith.mulf %40, %30 : vector<1x256xf32>
    %42 = arith.addf %39, %41 : vector<1x256xf32>
    %c17_i32 = arith.constant 17 : i32
    %43 = tpu.dynamic_rotate %42 by %c17_i32 dim 1 : vector<1x256xf32>, i32 -> vector<1x256xf32>
    %44 = vector.extract_strided_slice %31 {offsets = [0, 0], sizes = [1, 256], strides = [1, 1]} : vector<9x256xf32> to vector<1x256xf32>
    %45 = arith.mulf %43, %44 : vector<1x256xf32>
    %46 = arith.addf %35, %45 : vector<1x256xf32>
    %c1 = arith.constant 1 : index
    %47 = memref.load %arg7[%c1] : memref<19xf32, #tpu.memory_space<smem>>
    %c10 = arith.constant 10 : index
    %48 = memref.load %arg7[%c10] : memref<19xf32, #tpu.memory_space<smem>>
    %49 = vector.broadcast %47 : f32 to vector<1x256xf32>
    %50 = arith.mulf %49, %27 : vector<1x256xf32>
    %51 = vector.broadcast %48 : f32 to vector<1x256xf32>
    %52 = arith.mulf %51, %30 : vector<1x256xf32>
    %53 = arith.addf %50, %52 : vector<1x256xf32>
    %c16_i32 = arith.constant 16 : i32
    %54 = tpu.dynamic_rotate %53 by %c16_i32 dim 1 : vector<1x256xf32>, i32 -> vector<1x256xf32>
    %55 = vector.extract_strided_slice %31 {offsets = [1, 0], sizes = [1, 256], strides = [1, 1]} : vector<9x256xf32> to vector<1x256xf32>
    %56 = arith.mulf %54, %55 : vector<1x256xf32>
    %57 = arith.addf %46, %56 : vector<1x256xf32>
    %c2 = arith.constant 2 : index
    %58 = memref.load %arg7[%c2] : memref<19xf32, #tpu.memory_space<smem>>
    %c11 = arith.constant 11 : index
    %59 = memref.load %arg7[%c11] : memref<19xf32, #tpu.memory_space<smem>>
    %60 = vector.broadcast %58 : f32 to vector<1x256xf32>
    %61 = arith.mulf %60, %27 : vector<1x256xf32>
    %62 = vector.broadcast %59 : f32 to vector<1x256xf32>
    %63 = arith.mulf %62, %30 : vector<1x256xf32>
    %64 = arith.addf %61, %63 : vector<1x256xf32>
    %c15_i32 = arith.constant 15 : i32
    %65 = tpu.dynamic_rotate %64 by %c15_i32 dim 1 : vector<1x256xf32>, i32 -> vector<1x256xf32>
    %66 = vector.extract_strided_slice %31 {offsets = [2, 0], sizes = [1, 256], strides = [1, 1]} : vector<9x256xf32> to vector<1x256xf32>
    %67 = arith.mulf %65, %66 : vector<1x256xf32>
    %68 = arith.addf %57, %67 : vector<1x256xf32>
    %c3 = arith.constant 3 : index
    %69 = memref.load %arg7[%c3] : memref<19xf32, #tpu.memory_space<smem>>
    %c12 = arith.constant 12 : index
    %70 = memref.load %arg7[%c12] : memref<19xf32, #tpu.memory_space<smem>>
    %71 = vector.broadcast %69 : f32 to vector<1x256xf32>
    %72 = arith.mulf %71, %27 : vector<1x256xf32>
    %73 = vector.broadcast %70 : f32 to vector<1x256xf32>
    %74 = arith.mulf %73, %30 : vector<1x256xf32>
    %75 = arith.addf %72, %74 : vector<1x256xf32>
    %c1_i32 = arith.constant 1 : i32
    %76 = tpu.dynamic_rotate %75 by %c1_i32 dim 1 : vector<1x256xf32>, i32 -> vector<1x256xf32>
    %77 = vector.extract_strided_slice %31 {offsets = [3, 0], sizes = [1, 256], strides = [1, 1]} : vector<9x256xf32> to vector<1x256xf32>
    %78 = arith.mulf %76, %77 : vector<1x256xf32>
    %79 = arith.addf %68, %78 : vector<1x256xf32>
    %c4 = arith.constant 4 : index
    %80 = memref.load %arg7[%c4] : memref<19xf32, #tpu.memory_space<smem>>
    %c13 = arith.constant 13 : index
    %81 = memref.load %arg7[%c13] : memref<19xf32, #tpu.memory_space<smem>>
    %82 = vector.broadcast %80 : f32 to vector<1x256xf32>
    %83 = arith.mulf %82, %27 : vector<1x256xf32>
    %84 = vector.broadcast %81 : f32 to vector<1x256xf32>
    %85 = arith.mulf %84, %30 : vector<1x256xf32>
    %86 = arith.addf %83, %85 : vector<1x256xf32>
    %87 = vector.extract_strided_slice %31 {offsets = [4, 0], sizes = [1, 256], strides = [1, 1]} : vector<9x256xf32> to vector<1x256xf32>
    %88 = arith.mulf %86, %87 : vector<1x256xf32>
    %89 = arith.addf %79, %88 : vector<1x256xf32>
    %c5 = arith.constant 5 : index
    %90 = memref.load %arg7[%c5] : memref<19xf32, #tpu.memory_space<smem>>
    %c14 = arith.constant 14 : index
    %91 = memref.load %arg7[%c14] : memref<19xf32, #tpu.memory_space<smem>>
    %92 = vector.broadcast %90 : f32 to vector<1x256xf32>
    %93 = arith.mulf %92, %27 : vector<1x256xf32>
    %94 = vector.broadcast %91 : f32 to vector<1x256xf32>
    %95 = arith.mulf %94, %30 : vector<1x256xf32>
    %96 = arith.addf %93, %95 : vector<1x256xf32>
    %c255_i32 = arith.constant 255 : i32
    %97 = tpu.dynamic_rotate %96 by %c255_i32 dim 1 : vector<1x256xf32>, i32 -> vector<1x256xf32>
    %98 = vector.extract_strided_slice %31 {offsets = [5, 0], sizes = [1, 256], strides = [1, 1]} : vector<9x256xf32> to vector<1x256xf32>
    %99 = arith.mulf %97, %98 : vector<1x256xf32>
    %100 = arith.addf %89, %99 : vector<1x256xf32>
    %c6 = arith.constant 6 : index
    %101 = memref.load %arg7[%c6] : memref<19xf32, #tpu.memory_space<smem>>
    %c15 = arith.constant 15 : index
    %102 = memref.load %arg7[%c15] : memref<19xf32, #tpu.memory_space<smem>>
    %103 = vector.broadcast %101 : f32 to vector<1x256xf32>
    %104 = arith.mulf %103, %27 : vector<1x256xf32>
    %105 = vector.broadcast %102 : f32 to vector<1x256xf32>
    %106 = arith.mulf %105, %30 : vector<1x256xf32>
    %107 = arith.addf %104, %106 : vector<1x256xf32>
    %c241_i32 = arith.constant 241 : i32
    %108 = tpu.dynamic_rotate %107 by %c241_i32 dim 1 : vector<1x256xf32>, i32 -> vector<1x256xf32>
    %109 = vector.extract_strided_slice %31 {offsets = [6, 0], sizes = [1, 256], strides = [1, 1]} : vector<9x256xf32> to vector<1x256xf32>
    %110 = arith.mulf %108, %109 : vector<1x256xf32>
    %111 = arith.addf %100, %110 : vector<1x256xf32>
    %c7 = arith.constant 7 : index
    %112 = memref.load %arg7[%c7] : memref<19xf32, #tpu.memory_space<smem>>
    %c16 = arith.constant 16 : index
    %113 = memref.load %arg7[%c16] : memref<19xf32, #tpu.memory_space<smem>>
    %114 = vector.broadcast %112 : f32 to vector<1x256xf32>
    %115 = arith.mulf %114, %27 : vector<1x256xf32>
    %116 = vector.broadcast %113 : f32 to vector<1x256xf32>
    %117 = arith.mulf %116, %30 : vector<1x256xf32>
    %118 = arith.addf %115, %117 : vector<1x256xf32>
    %c240_i32 = arith.constant 240 : i32
    %119 = tpu.dynamic_rotate %118 by %c240_i32 dim 1 : vector<1x256xf32>, i32 -> vector<1x256xf32>
    %120 = vector.extract_strided_slice %31 {offsets = [7, 0], sizes = [1, 256], strides = [1, 1]} : vector<9x256xf32> to vector<1x256xf32>
    %121 = arith.mulf %119, %120 : vector<1x256xf32>
    %122 = arith.addf %111, %121 : vector<1x256xf32>
    %c8 = arith.constant 8 : index
    %123 = memref.load %arg7[%c8] : memref<19xf32, #tpu.memory_space<smem>>
    %c17 = arith.constant 17 : index
    %124 = memref.load %arg7[%c17] : memref<19xf32, #tpu.memory_space<smem>>
    %125 = vector.broadcast %123 : f32 to vector<1x256xf32>
    %126 = arith.mulf %125, %27 : vector<1x256xf32>
    %127 = vector.broadcast %124 : f32 to vector<1x256xf32>
    %128 = arith.mulf %127, %30 : vector<1x256xf32>
    %129 = arith.addf %126, %128 : vector<1x256xf32>
    %c239_i32 = arith.constant 239 : i32
    %130 = tpu.dynamic_rotate %129 by %c239_i32 dim 1 : vector<1x256xf32>, i32 -> vector<1x256xf32>
    %131 = vector.extract_strided_slice %31 {offsets = [8, 0], sizes = [1, 256], strides = [1, 1]} : vector<9x256xf32> to vector<1x256xf32>
    %132 = arith.mulf %130, %131 : vector<1x256xf32>
    %133 = arith.addf %122, %132 : vector<1x256xf32>
    %134 = arith.negf %133 : vector<1x256xf32>
    %135 = math.exp %134 : vector<1x256xf32>
    %cst_22 = arith.constant 1.000000e+00 : f32
    %136 = vector.broadcast %cst_22 : f32 to vector<1x256xf32>
    %137 = arith.addf %136, %135 : vector<1x256xf32>
    %138 = arith.divf %136, %137 : vector<1x256xf32>
    %c0_23 = arith.constant 0 : index
    %c0_24 = arith.constant 0 : index
    %c0_25 = arith.constant 0 : index
    %139 = vector.load %arg1[%c0_23, %c0_24, %c0_25] : memref<1x8x256xf32, #tpu.memory_space<vmem>>, vector<1x8x256xf32>
    %140 = vector.shape_cast %26 : vector<1x8xf32> to vector<1x8x1xf32>
    %141 = vector.shape_cast %138 : vector<1x256xf32> to vector<1x1x256xf32>
    %cst_26 = arith.constant 1.000000e+00 : f32
    %142 = vector.broadcast %cst_26 : f32 to vector<1x1x256xf32>
    %143 = arith.addf %141, %142 : vector<1x1x256xf32>
    %144 = vector.broadcast %140 : vector<1x8x1xf32> to vector<1x8x256xf32>
    %145 = vector.broadcast %143 : vector<1x1x256xf32> to vector<1x8x256xf32>
    %146 = arith.addf %144, %145 : vector<1x8x256xf32>
    %147 = arith.mulf %139, %146 : vector<1x8x256xf32>
    %c0_27 = arith.constant 0 : index
    %c0_28 = arith.constant 0 : index
    %c0_29 = arith.constant 0 : index
    %148 = vector.load %arg8[%c0_27, %c0_28, %c0_29] : memref<1x8x256xf32, #tpu.memory_space<vmem>>, vector<1x8x256xf32>
    tpu.vector_store %arg8[%c0_27, %c0_28, %c0_29], %147 {strides = array<i32>} : memref<1x8x256xf32, #tpu.memory_space<vmem>>, vector<1x8x256xf32>,
    return
  }
  func.func @transform_0(%arg0: i32) -> (i32, i32, i32) {
    %c0_i32 = arith.constant 0 : i32
    %c0_i32_0 = arith.constant 0 : i32
    %c0_i32_1 = arith.constant 0 : i32
    return %arg0, %c0_i32, %c0_i32_0 : i32, i32, i32
  }
  func.func @transform_1(%arg0: i32) -> (i32, i32) {
    %c0_i32 = arith.constant 0 : i32
    %c0_i32_0 = arith.constant 0 : i32
    %c0_i32_1 = arith.constant 0 : i32
    return %c0_i32, %c0_i32_0 : i32, i32
  }
  func.func @transform_2(%arg0: i32) -> (i32, i32) {
    %c0_i32 = arith.constant 0 : i32
    %c0_i32_0 = arith.constant 0 : i32
    %c0_i32_1 = arith.constant 0 : i32
    return %c0_i32, %c0_i32_0 : i32, i32
  }
  func.func @transform_3(%arg0: i32) -> (i32, i32) {
    %c0_i32 = arith.constant 0 : i32
    %c0_i32_0 = arith.constant 0 : i32
    %c0_i32_1 = arith.constant 0 : i32
    return %c0_i32, %c0_i32_0 : i32, i32
  }
  func.func @transform_4(%arg0: i32) -> (i32, i32) {
    %c0_i32 = arith.constant 0 : i32
    %c0_i32_0 = arith.constant 0 : i32
    %c0_i32_1 = arith.constant 0 : i32
    return %c0_i32, %c0_i32_0 : i32, i32
  }
  func.func @transform_5(%arg0: i32) -> (i32, i32) {
    %c0_i32 = arith.constant 0 : i32
    %c0_i32_0 = arith.constant 0 : i32
    %c0_i32_1 = arith.constant 0 : i32
    return %c0_i32, %c0_i32_0 : i32, i32
  }
  func.func @transform_6(%arg0: i32) -> i32 {
    %c0_i32 = arith.constant 0 : i32
    %c0_i32_0 = arith.constant 0 : i32
    return %c0_i32 : i32
  }
  func.func @transform_7(%arg0: i32) -> (i32, i32, i32) {
    %c0_i32 = arith.constant 0 : i32
    %c0_i32_0 = arith.constant 0 : i32
    %c0_i32_1 = arith.constant 0 : i32
    return %arg0, %c0_i32, %c0_i32_0 : i32, i32, i32
  }
}

</mosaic_0001>

<llo_original>
// kernel: squeeze.2
$region0: #{squeeze.2}
  %s0 = inlined_call_operand.vmem [shape: f32[3,3], index: 0, kind: input, shape index: {}]
  %s1 = inlined_call_operand.vmem [shape: f32[9], index: 1, kind: output, shape index: {}]
  $region1: #{squeeze.2} parent=0
    #allocation0 [shape = 'u8[4096]{0}', space=vmem, size = 0x1000, scoped, tag = 'scoped mem for output reshape']
    #allocation1 [shape = 'u8[4096]{0}', space=vmem, size = 0x1000, scoped, tag = 'scoped mem for input reshape']
    %s3 = sshllo.u32 0, 4
    %v4 = vld [vmem:[%s0] sm:%s3]
    %5 = vst [vmem:[#allocation1] sm:%s3] %v4
    %v6 = vld [vmem:[#allocation1] sm:$0x1]
    %vm7 = vcmask 23552
    %8 = vst.msk [vmem:[#allocation0] sm:$0x1] %vm7, %v6
    %s9 = scalar_lea.vmem [#allocation1], 2
    %v10 = vld [vmem:[%s9] sm:$0x1]
    %11 = vrot.lane.b32.xlu0 %v10, 6
    %v12 = vpop.permute.xlu0 %11
    %vm13 = vcmask 72752
    %14 = vst.msk [vmem:[#allocation0] sm:$0x1] %vm13, %v12
    %s15 = scalar_lea.vmem [#allocation1], 1
    %v16 = vld [vmem:[%s15] sm:$0x1]
    %17 = vrot.lane.b32.xlu0 %v16, 3
    %v18 = vpop.permute.xlu0 %17
    %vm19 = vcmask 48152
    %20 = vst.msk [vmem:[#allocation0] sm:$0x1] %vm19, %v18
    %s22 = sshllo.u32 0, 1
    %v24 = vld [vmem:[#allocation0] sm:%s22]
    %s25 = sshllo.u32 0, 1
    %26 = vst [vmem:[%s1] sm:%s25] %v24

// kernel: _mixed_attention_impl.1
$region0: #{_mixed_attention_impl.1}
  #allocation0 [shape = 'u32[]', space=smem, size = 0x4, offset = 0x4, fixed_abs, tag = 'smem constant byte address 0x4 - core index']
  #allocation1 [shape = 'u32[144,128]{1,0:T(1,128)}', space=vmem, size = 0x12000, scoped, tag = 'internal scratch']
  %s0 = inlined_call_operand.vmem [shape: f32[2,8,256], index: 0, kind: input, shape index: {}]
  %s1 = inlined_call_operand.vmem [shape: f32[8,2], index: 1, kind: input, shape index: {}]
  %s2 = inlined_call_operand.vmem [shape: f32[1,2], index: 2, kind: input, shape index: {}]
  %s3 = inlined_call_operand.vmem [shape: f32[2,8], index: 3, kind: input, shape index: {}]
  %s4 = inlined_call_operand.vmem [shape: f32[1,8], index: 4, kind: input, shape index: {}]
  %s5 = inlined_call_operand.vmem [shape: f32[9,256], index: 5, kind: input, shape index: {}]
  %s6 = inlined_call_operand.vmem [shape: f32[19], index: 6, kind: input, shape index: {}]
  %s7 = inlined_call_operand.vmem [shape: f32[2,8,256], index: 7, kind: output, shape index: {}]
  %s8 = sld [smem:[#allocation0]]
  $region65: #{_mixed_attention_impl.1} parent=0
    _
  %s10 = ssub.s32 1, %s8
  %s11 = scalar_select 0, %s10, %s8
  $region1: #{_mixed_attention_impl.1} parent=0
    #allocation2 [shape = 'u8[512]{0}', space=smem, size = 0x200, scoped, tag = 'input window, operand 6, single buffered']
    #allocation3 [shape = 's32[2]{0}', space=sflag, size = 0x8, scoped, tag = 'scoped memory for _mixed_attention_impl.1']
    %12 = vsyncpa [#allocation3], 0
    loop: start=0, step=1, limit=4
    $region2: #{_mixed_attention_impl.1} parent=1 // loop_pre_header
      _
    $region3: #{_mixed_attention_impl.1} parent=1 // loop_header
      %s14 = sphi 0, %s18
      %p15 = scmp.ge.s32.totalorder %s14, 4
      %s24 = sphi 0, %s26
      %s27 = sphi 0, %s24
      %s28 = sphi 0, %s27
      %s44 = sphi 0, %s28
      %s48 = sphi 0, %s48
      %s50 = sphi 0, %s48
      %s51 = sphi 0, %s50
      %s65 = sphi 0, %s51
      %s69 = sphi 0, %s69
      %s71 = sphi 0, %s69
      %s72 = sphi 0, %s71
      %s86 = sphi 0, %s72
      %s90 = sphi 0, %s90
      %s92 = sphi 0, %s90
      %s93 = sphi 0, %s92
      %s107 = sphi 0, %s93
      %s111 = sphi 0, %s111
      %s113 = sphi 0, %s111
      %s114 = sphi 0, %s113
      %s128 = sphi 0, %s114
      %s132 = sphi 0, %s132
      %s134 = sphi 0, %s132
      %s135 = sphi 0, %s134
      %s149 = sphi 0, %s135
      %s153 = sphi 0, %s153
      %s155 = sphi 0, %s153
      %s156 = sphi 0, %s155
      %s170 = sphi 0, %s156
      %s176 = sphi 0, %s178
      %s179 = sphi 0, %s176
      %s180 = sphi 0, %s179
      %s196 = sphi 0, %s180
    $region4: #{_mixed_attention_impl.1} parent=1 // loop_header_branch
      %17 = sbr.rel (%p15) target = $region8
    $region5: #{_mixed_attention_impl.1} parent=1 // loop_body
      %s19 = ssub.s32 %s14, 1
      %s20 = ssub.s32 %s14, 2
      %s21 = sadd.s32 %s14, 1
      %s22 = ssub.s32 %s14, %s21
      %p23 = scmp.eq.s32.totalorder %s22, 0
      %s25 = sadd.s32 %s24, 1
      %s26 = scalar_select %p23, %s24, %s25
      %p29 = pneg %p23
      %p30 = scmp.eq.s32.totalorder %s14, 1
      %p31 = por %p29, %p30
      %p32 = scmp.ne.s32.totalorder %s24, %s27
      %p33 = scmp.eq.s32.totalorder %s14, 0
      %p34 = por %p32, %p33
      %p35 = scmp.ne.s32.totalorder %s24, %s27
      %p36 = scmp.eq.s32.totalorder %s19, 1
      %p37 = por %p35, %p36
      %p38 = scmp.ne.s32.totalorder %s27, %s28
      %p39 = scmp.eq.s32.totalorder %s19, 0
      %p40 = por %p38, %p39
      %p41 = scmp.ne.s32.totalorder %s27, %s28
      %p42 = scmp.eq.s32.totalorder %s20, 1
      %p43 = por %p41, %p42
      %p45 = scmp.ne.s32.totalorder %s28, %s44
      %p46 = scmp.eq.s32.totalorder %s20, 0
      %p47 = por %p45, %p46
      %s49 = sadd.s32 %s48, 1
      %p52 = scmp.eq.s32.totalorder %s14, 1
      %p53 = scmp.ne.s32.totalorder %s48, %s50
      %p54 = scmp.eq.s32.totalorder %s14, 0
      %p55 = por %p53, %p54
      %p56 = scmp.ne.s32.totalorder %s48, %s50
      %p57 = scmp.eq.s32.totalorder %s19, 1
      %p58 = por %p56, %p57
      %p59 = scmp.ne.s32.totalorder %s50, %s51
      %p60 = scmp.eq.s32.totalorder %s19, 0
      %p61 = por %p59, %p60
      %p62 = scmp.ne.s32.totalorder %s50, %s51
      %p63 = scmp.eq.s32.totalorder %s20, 1
      %p64 = por %p62, %p63
      %p66 = scmp.ne.s32.totalorder %s51, %s65
      %p67 = scmp.eq.s32.totalorder %s20, 0
      %p68 = por %p66, %p67
      %s70 = sadd.s32 %s69, 1
      %p73 = scmp.eq.s32.totalorder %s14, 1
      %p74 = scmp.ne.s32.totalorder %s69, %s71
      %p75 = scmp.eq.s32.totalorder %s14, 0
      %p76 = por %p74, %p75
      %p77 = scmp.ne.s32.totalorder %s69, %s71
      %p78 = scmp.eq.s32.totalorder %s19, 1
      %p79 = por %p77, %p78
      %p80 = scmp.ne.s32.totalorder %s71, %s72
      %p81 = scmp.eq.s32.totalorder %s19, 0
      %p82 = por %p80, %p81
      %p83 = scmp.ne.s32.totalorder %s71, %s72
      %p84 = scmp.eq.s32.totalorder %s20, 1
      %p85 = por %p83, %p84
      %p87 = scmp.ne.s32.totalorder %s72, %s86
      %p88 = scmp.eq.s32.totalorder %s20, 0
      %p89 = por %p87, %p88
      %s91 = sadd.s32 %s90, 1
      %p94 = scmp.eq.s32.totalorder %s14, 1
      %p95 = scmp.ne.s32.totalorder %s90, %s92
      %p96 = scmp.eq.s32.totalorder %s14, 0
      %p97 = por %p95, %p96
      %p98 = scmp.ne.s32.totalorder %s90, %s92
      %p99 = scmp.eq.s32.totalorder %s19, 1
      %p100 = por %p98, %p99
      %p101 = scmp.ne.s32.totalorder %s92, %s93
      %p102 = scmp.eq.s32.totalorder %s19, 0
      %p103 = por %p101, %p102
      %p104 = scmp.ne.s32.totalorder %s92, %s93
      %p105 = scmp.eq.s32.totalorder %s20, 1
      %p106 = por %p104, %p105
      %p108 = scmp.ne.s32.totalorder %s93, %s107
      %p109 = scmp.eq.s32.totalorder %s20, 0
      %p110 = por %p108, %p109
      %s112 = sadd.s32 %s111, 1
      %p115 = scmp.eq.s32.totalorder %s14, 1
      %p116 = scmp.ne.s32.totalorder %s111, %s113
      %p117 = scmp.eq.s32.totalorder %s14, 0
      %p118 = por %p116, %p117
      %p119 = scmp.ne.s32.totalorder %s111, %s113
      %p120 = scmp.eq.s32.totalorder %s19, 1
      %p121 = por %p119, %p120
      %p122 = scmp.ne.s32.totalorder %s113, %s114
      %p123 = scmp.eq.s32.totalorder %s19, 0
      %p124 = por %p122, %p123
      %p125 = scmp.ne.s32.totalorder %s113, %s114
      %p126 = scmp.eq.s32.totalorder %s20, 1
      %p127 = por %p125, %p126
      %p129 = scmp.ne.s32.totalorder %s114, %s128
      %p130 = scmp.eq.s32.totalorder %s20, 0
      %p131 = por %p129, %p130
      %s133 = sadd.s32 %s132, 1
      %p136 = scmp.eq.s32.totalorder %s14, 1
      %p137 = scmp.ne.s32.totalorder %s132, %s134
      %p138 = scmp.eq.s32.totalorder %s14, 0
      %p139 = por %p137, %p138
      %p140 = scmp.ne.s32.totalorder %s132, %s134
      %p141 = scmp.eq.s32.totalorder %s19, 1
      %p142 = por %p140, %p141
      %p143 = scmp.ne.s32.totalorder %s134, %s135
      %p144 = scmp.eq.s32.totalorder %s19, 0
      %p145 = por %p143, %p144
      %p146 = scmp.ne.s32.totalorder %s134, %s135
      %p147 = scmp.eq.s32.totalorder %s20, 1
      %p148 = por %p146, %p147
      %p150 = scmp.ne.s32.totalorder %s135, %s149
      %p151 = scmp.eq.s32.totalorder %s20, 0
      %p152 = por %p150, %p151
      %s154 = sadd.s32 %s153, 1
      %p157 = scmp.eq.s32.totalorder %s14, 1
      %p158 = scmp.ne.s32.totalorder %s153, %s155
      %p159 = scmp.eq.s32.totalorder %s14, 0
      %p160 = por %p158, %p159
      %p161 = scmp.ne.s32.totalorder %s153, %s155
      %p162 = scmp.eq.s32.totalorder %s19, 1
      %p163 = por %p161, %p162
      %p164 = scmp.ne.s32.totalorder %s155, %s156
      %p165 = scmp.eq.s32.totalorder %s19, 0
      %p166 = por %p164, %p165
      %p167 = scmp.ne.s32.totalorder %s155, %s156
      %p168 = scmp.eq.s32.totalorder %s20, 1
      %p169 = por %p167, %p168
      %p171 = scmp.ne.s32.totalorder %s156, %s170
      %p172 = scmp.eq.s32.totalorder %s20, 0
      %p173 = por %p171, %p172
      %s174 = ssub.s32 %s14, %s21
      %p175 = scmp.eq.s32.totalorder %s174, 0
      %s177 = sadd.s32 %s176, 1
      %s178 = scalar_select %p175, %s176, %s177
      %p181 = pneg %p175
      %p182 = scmp.eq.s32.totalorder %s14, 1
      %p183 = por %p181, %p182
      %p184 = scmp.ne.s32.totalorder %s176, %s179
      %p185 = scmp.eq.s32.totalorder %s14, 0
      %p186 = por %p184, %p185
      %p187 = scmp.ne.s32.totalorder %s176, %s179
      %p188 = scmp.eq.s32.totalorder %s19, 1
      %p189 = por %p187, %p188
      %p190 = scmp.ne.s32.totalorder %s179, %s180
      %p191 = scmp.eq.s32.totalorder %s19, 0
      %p192 = por %p190, %p191
      %p193 = scmp.ne.s32.totalorder %s179, %s180
      %p194 = scmp.eq.s32.totalorder %s20, 1
      %p195 = por %p193, %p194
      %p197 = scmp.ne.s32.totalorder %s180, %s196
      %p198 = scmp.eq.s32.totalorder %s20, 0
      %p199 = por %p197, %p198
      %p200 = scmp.le.s32.totalorder 1, %s14
      %p201 = scmp.lt.s32.totalorder %s14, 3
      %p202 = pnand %p200, %p201
      %p203 = pneg %p202
      // Predicated region
      $region9: #{_mixed_attention_impl.1} parent=5 // pred_check
        _
      $region10: #{_mixed_attention_impl.1} parent=5 // pred_check_branch
        %205 = sbr.rel (%p202) target = $region12
      $region11: #{_mixed_attention_impl.1} parent=5 // pred_region
        %s206 = ssub.s32 %s14, 1
        // Predicated region
        $region13: #{_mixed_attention_impl.1} parent=11 // pred_check
          %p207 = pneg %p61
        $region14: #{_mixed_attention_impl.1} parent=11 // pred_check_branch
          %209 = sbr.rel (%p207) target = $region16
        $region15: #{_mixed_attention_impl.1} parent=11 // pred_region
          _
        $region16: #{_mixed_attention_impl.1} parent=11 // pred_fallthru
          _
        // Predicated region
        $region17: #{_mixed_attention_impl.1} parent=11 // pred_check
          %p210 = pneg %p82
        $region18: #{_mixed_attention_impl.1} parent=11 // pred_check_branch
          %212 = sbr.rel (%p210) target = $region20
        $region19: #{_mixed_attention_impl.1} parent=11 // pred_region
          _
        $region20: #{_mixed_attention_impl.1} parent=11 // pred_fallthru
          _
        // Predicated region
        $region21: #{_mixed_attention_impl.1} parent=11 // pred_check
          %p213 = pneg %p103
        $region22: #{_mixed_attention_impl.1} parent=11 // pred_check_branch
          %215 = sbr.rel (%p213) target = $region24
        $region23: #{_mixed_attention_impl.1} parent=11 // pred_region
          _
        $region24: #{_mixed_attention_impl.1} parent=11 // pred_fallthru
          _
        // Predicated region
        $region25: #{_mixed_attention_impl.1} parent=11 // pred_check
          %p216 = pneg %p124
        $region26: #{_mixed_attention_impl.1} parent=11 // pred_check_branch
          %218 = sbr.rel (%p216) target = $region28
        $region27: #{_mixed_attention_impl.1} parent=11 // pred_region
          _
        $region28: #{_mixed_attention_impl.1} parent=11 // pred_fallthru
          _
        // Predicated region
        $region29: #{_mixed_attention_impl.1} parent=11 // pred_check
          %p219 = pneg %p145
        $region30: #{_mixed_attention_impl.1} parent=11 // pred_check_branch
          %221 = sbr.rel (%p219) target = $region32
        $region31: #{_mixed_attention_impl.1} parent=11 // pred_region
          _
        $region32: #{_mixed_attention_impl.1} parent=11 // pred_fallthru
          _
        // Predicated region
        $region33: #{_mixed_attention_impl.1} parent=11 // pred_check
          %p222 = pneg %p166
        $region34: #{_mixed_attention_impl.1} parent=11 // pred_check_branch
          %224 = sbr.rel (%p222) target = $region36
        $region35: #{_mixed_attention_impl.1} parent=11 // pred_region
          %s226 = ssub.s32 16, 16
          %227 = vsyncadd [#allocation3], %s226
          %s229 = sshll.u32 %s6, 4
          %s230 = int_to_ptr.vmem [resolvable:$true] %s229
          %232 = dma.vmem_to_smem %s230, 16, [#allocation2], [#allocation3]
        $region36: #{_mixed_attention_impl.1} parent=11 // pred_fallthru
          _
      $region12: #{_mixed_attention_impl.1} parent=5 // pred_fallthru
        _
      %p233 = scmp.lt.s32.totalorder %s14, 2
      // Predicated region
      $region37: #{_mixed_attention_impl.1} parent=5 // pred_check
        %p234 = pneg %p233
      $region38: #{_mixed_attention_impl.1} parent=5 // pred_check_branch
        %236 = sbr.rel (%p234) target = $region40
      $region39: #{_mixed_attention_impl.1} parent=5 // pred_region
        // Predicated region
        $region41: #{_mixed_attention_impl.1} parent=39 // pred_check
          %p237 = pneg %p34
        $region42: #{_mixed_attention_impl.1} parent=39 // pred_check_branch
          %239 = sbr.rel (%p237) target = $region44
        $region43: #{_mixed_attention_impl.1} parent=39 // pred_region
          %p240 = scmp.lt.s32.totalorder %s14, 1
          %s241 = scalar_select %p240, %s14, 1
          %s242 = smul.addr %s241, 2
          %s243 = smul.addr %s242, 8
          %s244 = scalar_lea.vmem %s0, %s243
        $region44: #{_mixed_attention_impl.1} parent=39 // pred_fallthru
          _
      $region40: #{_mixed_attention_impl.1} parent=5 // pred_fallthru
        _
      %p245 = scmp.le.s32.totalorder 1, %s14
      %p246 = scmp.lt.s32.totalorder %s14, 3
      %p247 = pnand %p245, %p246
      %p248 = pneg %p247
      // Predicated region
      $region45: #{_mixed_attention_impl.1} parent=5 // pred_check
        _
      $region46: #{_mixed_attention_impl.1} parent=5 // pred_check_branch
        %250 = sbr.rel (%p247) target = $region48
      $region47: #{_mixed_attention_impl.1} parent=5 // pred_region
        %s251 = ssub.s32 %s14, 1
        // Predicated region
        $region49: #{_mixed_attention_impl.1} parent=47 // pred_check
          %p252 = pneg %p166
        $region50: #{_mixed_attention_impl.1} parent=47 // pred_check_branch
          %254 = sbr.rel (%p252) target = $region52
        $region51: #{_mixed_attention_impl.1} parent=47 // pred_region
          %255 = dma.done [#allocation3], 16
        $region52: #{_mixed_attention_impl.1} parent=47 // pred_fallthru
          _
        %256 = sfence
        %p257 = scmp.lt.s32.totalorder %s19, 1
        %s258 = scalar_select %p257, %s19, 1
        %s259 = smul.addr %s258, 2
        %s260 = smul.addr %s259, 8
        %s261 = scalar_lea.vmem %s0, %s260
        %p262 = pneg %p40
        %p263 = pneg %p37
        %p264 = pneg %p61
        %p265 = pneg %p58
        %p266 = pneg %p82
        %p267 = pneg %p79
        %p268 = pneg %p103
        %p269 = pneg %p100
        %p270 = pneg %p124
        %p271 = pneg %p121
        %p272 = pneg %p145
        %p273 = pneg %p142
        %p274 = pneg %p166
        %p275 = pneg %p163
        %p276 = pneg %p192
        %p277 = pneg %p189
        %p278 = scmp.lt.s32.totalorder %s19, 1
        %s279 = scalar_select %p278, %s19, 1
        %s280 = smul.addr %s279, 2
        %s281 = smul.addr %s280, 8
        %s282 = scalar_lea.vmem %s7, %s281
        %p283 = scmp.lt.s32.totalorder %s19, 1
        %s284 = scalar_select %p283, %s19, 1
        %s285 = smul.addr %s284, 2
        %s286 = smul.addr %s285, 8
        %s287 = scalar_lea.vmem %s0, %s286
        %p288 = scmp.lt.s32.totalorder %s19, 1
        %s289 = scalar_select %p288, %s19, 1
        %s290 = smul.addr %s289, 2
        %s291 = smul.addr %s290, 8
        %s292 = scalar_lea.vmem %s7, %s291
        %v293 = vld [vmem:[%s287] sm:$0xff]
        %v294 = vld [vmem:[%s287 + $0x8] sm:$0xff]
        %v295 = vadd.f32 %v293, %v294
        %296 = vadd.xlane.f32.xlu0 %v295
        %v297 = vpop.xlane.xlu0 %296
        %v298 = vmul.f32 %v297, 0.00390625
        %v299 = vld [vmem:[%s1] sm:$0xff]
        %v300 = vmul.f32 %v298, %v299
        %vm301 = vcmask 15360
        %v302 = vsel %vm301, %v300, 0.0
        %v303 = vrot.slane %v302, 4
        %v304 = vadd.f32 %v302, %v303
        %v305 = vrot.slane %v304, 2
        %v306 = vadd.f32 %v304, %v305
        %v307 = vrot.slane %v306, 1
        %v308 = vadd.f32 %v306, %v307
        %v309 = vld [vmem:[%s2] sm:$0x1]
        %v310 = vadd.f32 %v308, %v309
        %v311 = vmax.f32 %v310, 0.0
        %v312 = vlaneseq
        %v313 = vshrl.u32 %v312, 7
        %v314 = vsub.s32 0, %v313
        %v315 = vrot.slane %v311, %v314
        %317 = vbcast.lane.b32.xlu0 %v315, 256
        %v318 = vpop.permute.xlu0 %317
        %v319 = vld [vmem:[%s3] sm:$0x3]
        %v320 = vmul.f32 %v318, %v319
        %vm321 = vcmask 58368
        %v322 = vsel %vm321, %v320, 0.0
        %v323 = vrot.slane %v322, 4
        %v324 = vadd.f32 %v322, %v323
        %v325 = vrot.slane %v324, 2
        %v326 = vadd.f32 %v324, %v325
        %v327 = vrot.slane %v326, 1
        %v328 = vadd.f32 %v326, %v327
        %v329 = vld [vmem:[%s4] sm:$0x1]
        %v330 = vadd.f32 %v328, %v329
        %v331 = vxor.u32 %v330, 2147483648
        %v332 = vmul.f32 %v331, 1.442695
        %v333 = vpow.pop %v332
        %v334 = vadd.f32 %v333, 1.0
        %v335 = vrcp.pop %v334
        %v336 = vmul.f32 1.0, %v335
        %v337 = vrot.slane %v293, 4
        %v338 = vmax.f32 %v293, %v337
        %v339 = vrot.slane %v338, 2
        %v340 = vmax.f32 %v338, %v339
        %v341 = vrot.slane %v340, 1
        %v342 = vmax.f32 %v340, %v341
        %v343 = vrot.slane %v294, 4
        %v344 = vmax.f32 %v294, %v343
        %v345 = vrot.slane %v344, 2
        %v346 = vmax.f32 %v344, %v345
        %v347 = vrot.slane %v346, 1
        %v348 = vmax.f32 %v346, %v347
        %v349 = vrot.slane %v293, 4
        %v350 = vadd.f32 %v293, %v349
        %v351 = vrot.slane %v350, 2
        %v352 = vadd.f32 %v350, %v351
        %v353 = vrot.slane %v352, 1
        %v354 = vadd.f32 %v352, %v353
        %v355 = vrot.slane %v294, 4
        %v356 = vadd.f32 %v294, %v355
        %v357 = vrot.slane %v356, 2
        %v358 = vadd.f32 %v356, %v357
        %v359 = vrot.slane %v358, 1
        %v360 = vadd.f32 %v358, %v359
        %v361 = vmul.f32 %v354, 0.125
        %v362 = vmul.f32 %v360, 0.125
        %v363 = vld [vmem:[%s5] sm:$0xff]
        %v364 = vld [vmem:[%s5 + $0x8] sm:$0xff]
        %v365 = vld [vmem:[%s5 + $0x10] sm:$0x1]
        %v366 = vld [vmem:[%s5 + $0x18] sm:$0x1]
        %s367 = sld [smem:[#allocation2 + $0x12]]
        %v368 = vstv %s367
        %v369 = vadd.f32 %v368, 0.0
        %s370 = sld [smem:[#allocation2]]
        %s371 = sld [smem:[#allocation2 + $0x9]]
        %v372 = vstv %s370
        %v373 = vmul.f32 %v372, %v342
        %v374 = vmul.f32 %v372, %v348
        %v375 = vstv %s371
        %v376 = vmul.f32 %v375, %v361
        %v377 = vmul.f32 %v375, %v362
        %v378 = vadd.f32 %v373, %v376
        %v379 = vadd.f32 %v374, %v377
        %380 = vrot.lane.b32.xlu0 %v378, 17
        %v381 = vpop.permute.xlu0 %380
        %382 = vrot.lane.b32.xlu0 %v379, 17
        %v383 = vpop.permute.xlu0 %382
        %v384 = vlaneseq
        %v385 = vand.u32 %v384, 127
        %vm386 = vcmp.lt.s32.totalorder %v385, 17
        %v387 = vsel %vm386, %v381, %v383
        %v388 = vsel %vm386, %v383, %v381
        %v389 = vmul.f32 %v388, %v363
        %v390 = vmul.f32 %v387, %v364
        %v391 = vadd.f32 %v369, %v389
        %v392 = vadd.f32 %v369, %v390
        %s393 = sld [smem:[#allocation2 + $0x1]]
        %s394 = sld [smem:[#allocation2 + $0xa]]
        %v395 = vstv %s393
        %v396 = vmul.f32 %v395, %v342
        %v397 = vmul.f32 %v395, %v348
        %v398 = vstv %s394
        %v399 = vmul.f32 %v398, %v361
        %v400 = vmul.f32 %v398, %v362
        %v401 = vadd.f32 %v396, %v399
        %v402 = vadd.f32 %v397, %v400
        %403 = vrot.lane.b32.xlu0 %v401, 16
        %v404 = vpop.permute.xlu0 %403
        %405 = vrot.lane.b32.xlu0 %v402, 16
        %v406 = vpop.permute.xlu0 %405
        %vm407 = vcmp.lt.s32.totalorder %v385, 16
        %v408 = vsel %vm407, %v404, %v406
        %v409 = vsel %vm407, %v406, %v404
        %v412 = vrot.slane %v363, 1
        %v413 = vrot.slane %v364, 1
        %v416 = vmul.f32 %v409, %v412
        %v417 = vmul.f32 %v408, %v413
        %v418 = vadd.f32 %v391, %v416
        %v419 = vadd.f32 %v392, %v417
        %s420 = sld [smem:[#allocation2 + $0x2]]
        %s421 = sld [smem:[#allocation2 + $0xb]]
        %v422 = vstv %s420
        %v423 = vmul.f32 %v422, %v342
        %v424 = vmul.f32 %v422, %v348
        %v425 = vstv %s421
        %v426 = vmul.f32 %v425, %v361
        %v427 = vmul.f32 %v425, %v362
        %v428 = vadd.f32 %v423, %v426
        %v429 = vadd.f32 %v424, %v427
        %430 = vrot.lane.b32.xlu0 %v428, 15
        %v431 = vpop.permute.xlu0 %430
        %432 = vrot.lane.b32.xlu0 %v429, 15
        %v433 = vpop.permute.xlu0 %432
        %vm434 = vcmp.lt.s32.totalorder %v385, 15
        %v435 = vsel %vm434, %v431, %v433
        %v436 = vsel %vm434, %v433, %v431
        %v437 = vrot.slane %v363, 2
        %v438 = vrot.slane %v364, 2
        %v441 = vmul.f32 %v436, %v437
        %v442 = vmul.f32 %v435, %v438
        %v443 = vadd.f32 %v418, %v441
        %v444 = vadd.f32 %v419, %v442
        %s445 = sld [smem:[#allocation2 + $0x3]]
        %s446 = sld [smem:[#allocation2 + $0xc]]
        %v447 = vstv %s445
        %v448 = vmul.f32 %v447, %v342
        %v449 = vmul.f32 %v447, %v348
        %v450 = vstv %s446
        %v451 = vmul.f32 %v450, %v361
        %v452 = vmul.f32 %v450, %v362
        %v453 = vadd.f32 %v448, %v451
        %v454 = vadd.f32 %v449, %v452
        %455 = vrot.lane.b32.xlu0 %v453, 1
        %v456 = vpop.permute.xlu0 %455
        %457 = vrot.lane.b32.xlu0 %v454, 1
        %v458 = vpop.permute.xlu0 %457
        %vm459 = vcmp.lt.s32.totalorder %v385, 1
        %v460 = vsel %vm459, %v456, %v458
        %v461 = vsel %vm459, %v458, %v456
        %v462 = vrot.slane %v363, 3
        %v463 = vrot.slane %v364, 3
        %v466 = vmul.f32 %v461, %v462
        %v467 = vmul.f32 %v460, %v463
        %v468 = vadd.f32 %v443, %v466
        %v469 = vadd.f32 %v444, %v467
        %s470 = sld [smem:[#allocation2 + $0x4]]
        %s471 = sld [smem:[#allocation2 + $0xd]]
        %v472 = vstv %s470
        %v473 = vmul.f32 %v472, %v342
        %v474 = vmul.f32 %v472, %v348
        %v475 = vstv %s471
        %v476 = vmul.f32 %v475, %v361
        %v477 = vmul.f32 %v475, %v362
        %v478 = vadd.f32 %v473, %v476
        %v479 = vadd.f32 %v474, %v477
        %v480 = vmul.f32 %v478, %v363
        %v481 = vmul.f32 %v479, %v364
        %v484 = vrot.slane %v480, 4
        %v485 = vrot.slane %v481, 4
        %v488 = vadd.f32 %v468, %v484
        %v489 = vadd.f32 %v469, %v485
        %s490 = sld [smem:[#allocation2 + $0x5]]
        %s491 = sld [smem:[#allocation2 + $0xe]]
        %v492 = vstv %s490
        %v493 = vmul.f32 %v492, %v342
        %v494 = vmul.f32 %v492, %v348
        %v495 = vstv %s491
        %v496 = vmul.f32 %v495, %v361
        %v497 = vmul.f32 %v495, %v362
        %v498 = vadd.f32 %v493, %v496
        %v499 = vadd.f32 %v494, %v497
        %500 = vrot.lane.b32.xlu0 %v498, 127
        %v501 = vpop.permute.xlu0 %500
        %502 = vrot.lane.b32.xlu0 %v499, 127
        %v503 = vpop.permute.xlu0 %502
        %vm504 = vcmp.lt.s32.totalorder %v385, 127
        %v505 = vsel %vm504, %v501, %v503
        %v506 = vsel %vm504, %v503, %v501
        %v507 = vrot.slane %v363, 5
        %v508 = vrot.slane %v364, 5
        %v511 = vmul.f32 %v505, %v507
        %v512 = vmul.f32 %v506, %v508
        %v513 = vadd.f32 %v488, %v511
        %v514 = vadd.f32 %v489, %v512
        %s515 = sld [smem:[#allocation2 + $0x6]]
        %s516 = sld [smem:[#allocation2 + $0xf]]
        %v517 = vstv %s515
        %v518 = vmul.f32 %v517, %v342
        %v519 = vmul.f32 %v517, %v348
        %v520 = vstv %s516
        %v521 = vmul.f32 %v520, %v361
        %v522 = vmul.f32 %v520, %v362
        %v523 = vadd.f32 %v518, %v521
        %v524 = vadd.f32 %v519, %v522
        %525 = vrot.lane.b32.xlu0 %v523, 113
        %v526 = vpop.permute.xlu0 %525
        %527 = vrot.lane.b32.xlu0 %v524, 113
        %v528 = vpop.permute.xlu0 %527
        %vm529 = vcmp.lt.s32.totalorder %v385, 113
        %v530 = vsel %vm529, %v526, %v528
        %v531 = vsel %vm529, %v528, %v526
        %v532 = vrot.slane %v363, 6
        %v533 = vrot.slane %v364, 6
        %v536 = vmul.f32 %v530, %v532
        %v537 = vmul.f32 %v531, %v533
        %v538 = vadd.f32 %v513, %v536
        %v539 = vadd.f32 %v514, %v537
        %s540 = sld [smem:[#allocation2 + $0x7]]
        %s541 = sld [smem:[#allocation2 + $0x10]]
        %v542 = vstv %s540
        %v543 = vmul.f32 %v542, %v342
        %v544 = vmul.f32 %v542, %v348
        %v545 = vstv %s541
        %v546 = vmul.f32 %v545, %v361
        %v547 = vmul.f32 %v545, %v362
        %v548 = vadd.f32 %v543, %v546
        %v549 = vadd.f32 %v544, %v547
        %550 = vrot.lane.b32.xlu0 %v548, 112
        %v551 = vpop.permute.xlu0 %550
        %552 = vrot.lane.b32.xlu0 %v549, 112
        %v553 = vpop.permute.xlu0 %552
        %vm554 = vcmp.lt.s32.totalorder %v385, 112
        %v555 = vsel %vm554, %v551, %v553
        %v556 = vsel %vm554, %v553, %v551
        %v557 = vrot.slane %v363, 7
        %v558 = vrot.slane %v364, 7
        %v561 = vmul.f32 %v555, %v557
        %v562 = vmul.f32 %v556, %v558
        %v563 = vadd.f32 %v538, %v561
        %v564 = vadd.f32 %v539, %v562
        %s565 = sld [smem:[#allocation2 + $0x8]]
        %s566 = sld [smem:[#allocation2 + $0x11]]
        %v567 = vstv %s565
        %v568 = vmul.f32 %v567, %v342
        %v569 = vmul.f32 %v567, %v348
        %v570 = vstv %s566
        %v571 = vmul.f32 %v570, %v361
        %v572 = vmul.f32 %v570, %v362
        %v573 = vadd.f32 %v568, %v571
        %v574 = vadd.f32 %v569, %v572
        %575 = vrot.lane.b32.xlu0 %v573, 111
        %v576 = vpop.permute.xlu0 %575
        %577 = vrot.lane.b32.xlu0 %v574, 111
        %v578 = vpop.permute.xlu0 %577
        %vm579 = vcmp.lt.s32.totalorder %v385, 111
        %v580 = vsel %vm579, %v576, %v578
        %v581 = vsel %vm579, %v578, %v576
        %v582 = vmul.f32 %v580, %v365
        %v583 = vmul.f32 %v581, %v366
        %v584 = vadd.f32 %v563, %v582
        %v585 = vadd.f32 %v564, %v583
        %v586 = vxor.u32 %v584, 2147483648
        %v587 = vxor.u32 %v585, 2147483648
        %v588 = vmul.f32 %v586, 1.442695
        %v589 = vpow.pop %v588
        %v590 = vmul.f32 %v587, 1.442695
        %v591 = vpow.pop %v590
        %v592 = vadd.f32 %v589, 1.0
        %v593 = vadd.f32 %v591, 1.0
        %v594 = vrcp.pop %v592
        %v595 = vmul.f32 1.0, %v594
        %v596 = vrcp.pop %v593
        %v597 = vmul.f32 1.0, %v596
        %v598 = vlaneseq
        %v599 = vshrl.u32 %v598, 7
        %v600 = vsub.s32 0, %v599
        %v601 = vrot.slane %v336, %v600
        %603 = vbcast.lane.b32.xlu0 %v601, 256
        %v604 = vpop.permute.xlu0 %603
        %v605 = vadd.f32 %v595, 1.0
        %v606 = vadd.f32 %v597, 1.0
        %v607 = vlaneseq
        %v608 = vshrl.u32 %v607, 7
        %v609 = vsub.s32 0, %v608
        %v610 = vrot.slane %v605, %v609
        %v611 = vlaneseq
        %v612 = vshrl.u32 %v611, 7
        %v613 = vsub.s32 0, %v612
        %v614 = vrot.slane %v606, %v613
        %v615 = vadd.f32 %v604, %v610
        %v616 = vadd.f32 %v604, %v614
        %v617 = vmul.f32 %v293, %v615
        %v618 = vmul.f32 %v294, %v616
        %619 = vst [vmem:[%s292] sm:$0xff] %v617
        %620 = vst [vmem:[%s292 + $0x8] sm:$0xff] %v618
        %p621 = scmp.lt.s32.totalorder %s19, 1
        %s622 = scalar_select %p621, %s19, 1
        %s623 = smul.addr %s622, 2
        %s624 = smul.addr %s623, 8
        %s625 = scalar_lea.vmem %s7, %s624
        // Predicated region
        $region53: #{_mixed_attention_impl.1} parent=47 // pred_check
          %p626 = pneg %p189
        $region54: #{_mixed_attention_impl.1} parent=47 // pred_check_branch
          %628 = sbr.rel (%p626) target = $region56
        $region55: #{_mixed_attention_impl.1} parent=47 // pred_region
          _
        $region56: #{_mixed_attention_impl.1} parent=47 // pred_fallthru
          _
      $region48: #{_mixed_attention_impl.1} parent=5 // pred_fallthru
        _
      %p629 = scmp.le.s32.totalorder 2, %s14
      // Predicated region
      $region57: #{_mixed_attention_impl.1} parent=5 // pred_check
        %p630 = pneg %p629
      $region58: #{_mixed_attention_impl.1} parent=5 // pred_check_branch
        %632 = sbr.rel (%p630) target = $region60
      $region59: #{_mixed_attention_impl.1} parent=5 // pred_region
        %s633 = ssub.s32 %s14, 2
        // Predicated region
        $region61: #{_mixed_attention_impl.1} parent=59 // pred_check
          %p634 = pneg %p195
        $region62: #{_mixed_attention_impl.1} parent=59 // pred_check_branch
          %636 = sbr.rel (%p634) target = $region64
        $region63: #{_mixed_attention_impl.1} parent=59 // pred_region
          %p637 = scmp.lt.s32.totalorder %s20, 1
          %s638 = scalar_select %p637, %s20, 1
          %s639 = smul.addr %s638, 2
          %s640 = smul.addr %s639, 8
          %s641 = scalar_lea.vmem %s7, %s640
        $region64: #{_mixed_attention_impl.1} parent=59 // pred_fallthru
          _
      $region60: #{_mixed_attention_impl.1} parent=5 // pred_fallthru
        _
    $region6: #{_mixed_attention_impl.1} parent=1 // loop_footer
      %s18 = sadd.s32 1, %s14
    $region7: #{_mixed_attention_impl.1} parent=1 // loop_footer_branch
      %13 = sbr.rel target = $region3
    $region8: #{_mixed_attention_impl.1} parent=1 // loop_exit
      _
    %642 = vsyncpa [#allocation3], 1
    %s643 = scalar_lea.sflag [#allocation3], 1
    %644 = vsyncpa %s643, 1

</llo_original>
